<compile_context>
chip_gen: v7x
topology: tpu7x:2x2x1
jax: 0.10.0
libtpu: 0.0.40
codegen_flags: <defaults>
</compile_context>

<pallas_src>
import functools

import jax
import jax.numpy as jnp
import numpy as np
from jax.experimental import pallas as pl
from jax.experimental.pallas import tpu as pltpu


def _round_up(x, m):
    return ((x + m - 1) // m) * m


# ----------------------------------------------------------------------------
# Kernel 1: NLL + ranking loss (alpha < 1).  Grid: (i blocks, j blocks).
# ----------------------------------------------------------------------------
def _nks_rank_kernel(haz_i_ref, surv_i_ref, surv_jT_ref, idxi_ref, evi_ref,
                     idxj_ref, evj_ref,
                     out_ref,
                     nll_sc, diag_sc, valid_sc, rank_sc, lhs_sc,
                     *, inv_sigma, inv_batch):
    j = pl.program_id(1)
    nj = pl.num_programs(1)
    tbi, T = haz_i_ref.shape

    idx_i = idxi_ref[...]                       # (TBi, 1) i32
    ev_i = evi_ref[...]                         # (TBi, 1) f32

    # ---- once per i block: nll, diag_A, validity, accumulator init --------
    @pl.when(j == 0)
    def _init():
        h_i = haz_i_ref[...]                    # (TBi, T)
        t_iota = jax.lax.broadcasted_iota(jnp.int32, (tbi, T), 1)
        mask_le = (t_iota <= idx_i).astype(jnp.float32)
        onehot_ev = jnp.where(t_iota == idx_i, ev_i, 0.0)   # y_bce tile
        lhs_sc[...] = onehot_ev                 # MXU LHS, reused across all j

        # validity: all hazards in [0, 1] (per row; global min in wrapper)
        ok = jnp.logical_and(h_i >= 0.0, h_i <= 1.0).astype(jnp.float32)
        valid_sc[...] = jnp.min(ok, axis=1, keepdims=True)

        # nll = cumsum(BCE)[i, idx_i] == masked row-sum (PyTorch -100 clamp)
        log_h = jnp.maximum(jnp.log(h_i), -100.0)
        log_1mh = jnp.maximum(jnp.log(1.0 - h_i), -100.0)
        bce = -(onehot_ev * log_h + (1.0 - onehot_ev) * log_1mh)
        nll_sc[...] = jnp.sum(bce * mask_le, axis=1, keepdims=True)

        # diag_A[i] / sigma = ev_i * surv[i, idx_i] / sigma
        diag = jnp.sum(onehot_ev * surv_i_ref[...], axis=1, keepdims=True)
        diag_sc[...] = diag * inv_sigma

        rank_sc[...] = jnp.zeros_like(rank_sc)

    # ---- per (i, j) tile: ranking-loss partial sum -------------------------
    # A^T tile on the MXU:  a_ji[i, jc] = ev_i * surv[j*TBj + jc, idx_i]
    a_ji = jax.lax.dot_general(
        lhs_sc[...], surv_jT_ref[...], (((1,), (0,)), ((), ())),
        precision=jax.lax.Precision.HIGHEST,
        preferred_element_type=jnp.float32)     # (TBi, TBj)

    # pair_rank_mat condition rebuilt on-chip (zero HBM traffic for the (B,B))
    idx_j = idxj_ref[...]                       # (1, TBj) i32
    ev_j = evj_ref[...]                         # (1, TBj) f32
    cond = jnp.logical_or(idx_i < idx_j,
                          jnp.logical_and(idx_i == idx_j, ev_j == 0.0))

    # exp((diag_A - A^T) / sigma), zeroed where the pair is not comparable;
    # pair_rank_mat's ev_i value is folded into the (TBi,1) row scale.
    exp_term = jnp.exp(diag_sc[...] - a_ji * inv_sigma)
    rank_sc[...] += ev_i * jnp.sum(jnp.where(cond, exp_term, 0.0),
                                   axis=1, keepdims=True)

    # ---- finalize: one lane-dense (TBi, 128) store per i block ------------
    @pl.when(j == nj - 1)
    def _finalize():
        lane = jax.lax.broadcasted_iota(jnp.int32, out_ref.shape, 1)
        out_ref[...] = jnp.where(
            lane == 0, nll_sc[...],
            jnp.where(lane == 1, rank_sc[...] * inv_batch,
                      jnp.where(lane == 2, valid_sc[...], 0.0)))


# ----------------------------------------------------------------------------
# Kernel 2: NLL only (alpha >= 1 fast path).  1-D grid over i blocks.
# ----------------------------------------------------------------------------
def _nks_nll_kernel(haz_ref, idxi_ref, evi_ref, out_ref):
    tbi, T = haz_ref.shape
    idx_i = idxi_ref[...]
    ev_i = evi_ref[...]
    h = haz_ref[...]

    t_iota = jax.lax.broadcasted_iota(jnp.int32, (tbi, T), 1)
    mask_le = (t_iota <= idx_i).astype(jnp.float32)
    onehot_ev = jnp.where(t_iota == idx_i, ev_i, 0.0)

    ok = jnp.logical_and(h >= 0.0, h <= 1.0).astype(jnp.float32)
    valid = jnp.min(ok, axis=1, keepdims=True)

    log_h = jnp.maximum(jnp.log(h), -100.0)
    log_1mh = jnp.maximum(jnp.log(1.0 - h), -100.0)
    bce = -(onehot_ev * log_h + (1.0 - onehot_ev) * log_1mh)
    nll = jnp.sum(bce * mask_le, axis=1, keepdims=True)

    lane = jax.lax.broadcasted_iota(jnp.int32, out_ref.shape, 1)
    out_ref[...] = jnp.where(lane == 0, nll,
                             jnp.where(lane == 1, valid, 0.0))


# ----------------------------------------------------------------------------
# Wrapper (glue)
# ----------------------------------------------------------------------------
def _reduce(x, reduction):
    if reduction == "mean":
        return jnp.mean(x)
    if reduction == "sum":
        return jnp.sum(x)
    return x


def _pick_tiles(B):
    """i/j tile sizes + padded batch: always >= 2 i blocks (keeps both v7x
    TensorCores busy on the 'parallel' axis); j tiles as large as possible
    (<= 1024 columns) to amortize grid-step overhead and j-side restream."""
    if B <= 512:
        tb_i = max(8, _round_up((B + 1) // 2, 8))
        bp = 2 * tb_i
    else:
        tb_i = 256
        bp = _round_up(B, tb_i)
    if bp <= 1024:
        tb_j = bp
    elif bp % 1024 == 0:
        tb_j = 1024
    elif bp % 512 == 0:
        tb_j = 512
    else:
        tb_j = 256
    return tb_i, tb_j, bp


def nks_summary_loss(hazards, idx_durations, events, alpha, sigma,
                     reduction="mean"):
    hazards = hazards.astype(jnp.float32)
    events = events.astype(jnp.float32)
    idx = idx_durations.astype(jnp.int32)
    B, T = hazards.shape

    compute_rank = bool(alpha < 1)
    tb_i, tb_j, bp = _pick_tiles(B)

    pad = bp - B
    if pad:
        # padded rows: hazards=0.5 (valid, finite logs), idx=-1 / ev=0 so both
        # the NLL terms and the on-chip rank condition are exactly 0 for them.
        hazards = jnp.pad(hazards, ((0, pad), (0, 0)), constant_values=0.5)
        idx = jnp.pad(idx, (0, pad), constant_values=-1)
        events = jnp.pad(events, (0, pad), constant_values=0.0)

    idx_col = idx[:, None]            # (Bp, 1)  i role (sublane layout)
    ev_col = events[:, None]

    if not compute_rank:
        # ---- alpha >= 1 fast path: 1-D grid, no j-role inputs / DMAs ------
        out = pl.pallas_call(
            _nks_nll_kernel,
            grid=(bp // tb_i,),
            in_specs=[
                pl.BlockSpec((tb_i, T), lambda i: (i, 0)),
                pl.BlockSpec((tb_i, 1), lambda i: (i, 0)),
                pl.BlockSpec((tb_i, 1), lambda i: (i, 0)),
            ],
            out_specs=pl.BlockSpec((tb_i, 128), lambda i: (i, 0)),
            out_shape=jax.ShapeDtypeStruct((bp, 128), jnp.float32),
            compiler_params=pltpu.CompilerParams(
                dimension_semantics=("parallel",)),
        )(hazards, idx_col, ev_col)
        nll = out[:B, 0]
        valid = jnp.min(out[:B, 1])
        loss = _reduce(nll, reduction)
        return jnp.where(valid > 0.5, loss, jnp.float32(jnp.inf))

    # ---- alpha < 1: NLL + ranking loss -------------------------------------
    # O(B*T) cumulative-survival precompute (perf review #1): the kernel's rank
    # tile becomes a pure MXU matmul, no per-tile log()/exp(cum).
    surv = jnp.exp(jnp.cumsum(jnp.log((1.0 - hazards) + 1e-12), axis=1))
    surv_t = surv.T                   # (T, Bp): natural MXU RHS orientation
    idx_row = idx[None, :]            # (1, Bp)  j role (lane layout)
    ev_row = events[None, :]

    kernel = functools.partial(
        _nks_rank_kernel,
        inv_sigma=1.0 / float(sigma),
        inv_batch=1.0 / float(B),     # mean over the TRUE batch size
    )

    out = pl.pallas_call(
        kernel,
        grid=(bp // tb_i, bp // tb_j),
        in_specs=[
            pl.BlockSpec((tb_i, T), lambda i, j: (i, 0)),    # hazards, i role
            pl.BlockSpec((tb_i, T), lambda i, j: (i, 0)),    # surv,    i role
            pl.BlockSpec((T, tb_j), lambda i, j: (0, j)),    # surv^T,  j role
            pl.BlockSpec((tb_i, 1), lambda i, j: (i, 0)),    # idx_i
            pl.BlockSpec((tb_i, 1), lambda i, j: (i, 0)),    # ev_i
            pl.BlockSpec((1, tb_j), lambda i, j: (0, j)),    # idx_j (lanes)
            pl.BlockSpec((1, tb_j), lambda i, j: (0, j)),    # ev_j  (lanes)
        ],
        out_specs=pl.BlockSpec((tb_i, 128), lambda i, j: (i, 0)),
        out_shape=jax.ShapeDtypeStruct((bp, 128), jnp.float32),
        scratch_shapes=[
            pltpu.VMEM((tb_i, 1), jnp.float32),   # nll
            pltpu.VMEM((tb_i, 1), jnp.float32),   # diag_A / sigma
            pltpu.VMEM((tb_i, 1), jnp.float32),   # valid
            pltpu.VMEM((tb_i, 1), jnp.float32),   # rank-loss accumulator
            pltpu.VMEM((tb_i, T), jnp.float32),   # onehot*ev (MXU LHS)
        ],
        compiler_params=pltpu.CompilerParams(
            dimension_semantics=("parallel", "arbitrary"),
            vmem_limit_bytes=48 * 1024 * 1024),   # headroom, < v7x 64 MiB
    )(hazards, surv, surv_t, idx_col, ev_col, idx_row, ev_row)

    nll = out[:B, 0]                  # (B,)   matches torch .view(-1)
    rank_loss = out[:B, 1:2]          # (B,1)  matches torch mean(1, keepdim=True)
    valid = jnp.min(out[:B, 2])

    loss = alpha * _reduce(nll, reduction) + \
        (1.0 - alpha) * _reduce(rank_loss, reduction)
    # hazards outside [0, 1]  ->  inf (the PyTorch early-return)
    return jnp.where(valid > 0.5, loss, jnp.float32(jnp.inf))


# ----------------------------------------------------------------------------
# Pure-JAX reference (mirrors the PyTorch forward line-by-line)
# ----------------------------------------------------------------------------
def _pair_rank_mat(idx, events):
    dur_i = idx[:, None]
    dur_j = idx[None, :]
    ev_i = events[:, None]
    ev_j = events[None, :]
    cond = (dur_i < dur_j) | ((dur_i == dur_j) & (ev_j == 0.0))
    return jnp.where(cond, ev_i, 0.0)   # pycox stores ev_i itself


def nks_reference(hazards, idx_durations, events, alpha, sigma,
                  reduction="mean"):
    hazards = hazards.astype(jnp.float32)
    events = events.astype(jnp.float32)
    idx = idx_durations.astype(jnp.int32)
    B, T = hazards.shape

    onehot = (jnp.arange(T)[None, :] == idx[:, None]).astype(jnp.float32)
    y = onehot * events[:, None]
    log_h = jnp.maximum(jnp.log(hazards), -100.0)
    log_1mh = jnp.maximum(jnp.log(1.0 - hazards), -100.0)
    bce = -(y * log_h + (1.0 - y) * log_1mh)
    nll = jnp.take_along_axis(jnp.cumsum(bce, 1), idx[:, None], axis=1)[:, 0]

    surv = jnp.exp(jnp.cumsum(jnp.log((1.0 - hazards) + 1e-12), 1))
    A = surv @ y.T
    diag_A = jnp.diag(A)[None, :]
    differences = (jnp.ones((B, 1)) @ diag_A - A).T
    rank_mat = _pair_rank_mat(idx, events)
    rank_loss = jnp.mean(rank_mat * jnp.exp(differences / sigma),
                         axis=1, keepdims=True)

    if alpha < 1:
        loss = alpha * _reduce(nll, reduction) + \
            (1.0 - alpha) * _reduce(rank_loss, reduction)
    else:
        loss = _reduce(nll, reduction)
    valid = jnp.all((hazards >= 0.0) & (hazards <= 1.0))
    return jnp.where(valid, loss, jnp.float32(jnp.inf))


# ----------------------------------------------------------------------------
if __name__ == "__main__":
    key = jax.random.PRNGKey(0)
    alpha, sigma = 0.5, 0.1           # deterministic "module parameters"

    # case 1: aligned small batch
    B, T = 8, 16
    k1, k2, k3 = jax.random.split(key, 3)
    hazards = jax.nn.sigmoid(jax.random.normal(k1, (B, T), dtype=jnp.float32))
    idx_durations = jax.random.randint(k2, (B,), 0, T, dtype=jnp.int32)
    events = (jax.random.uniform(k3, (B,)) > 0.3).astype(jnp.float32)

    loss = jax.block_until_ready(
        nks_summary_loss(hazards, idx_durations, events, alpha, sigma, "mean"))
    ref = jax.block_until_ready(
        nks_reference(hazards, idx_durations, events, alpha, sigma, "mean"))
    np.testing.assert_allclose(np.asarray(loss), np.asarray(ref),
                               rtol=2e-2, atol=1e-4)
    assert np.isfinite(np.asarray(loss))

    # case 2: ragged batch (exercises row/column padding of the rank tiles)
    B2 = 13
    k4, k5, k6 = jax.random.split(jax.random.PRNGKey(1), 3)
    hz2 = jax.nn.sigmoid(jax.random.normal(k4, (B2, T), dtype=jnp.float32))
    id2 = jax.random.randint(k5, (B2,), 0, T, dtype=jnp.int32)
    ev2 = (jax.random.uniform(k6, (B2,)) > 0.3).astype(jnp.float32)

    loss2 = jax.block_until_ready(
        nks_summary_loss(hz2, id2, ev2, alpha, sigma, "mean"))
    ref2 = jax.block_until_ready(
        nks_reference(hz2, id2, ev2, alpha, sigma, "mean"))
    np.testing.assert_allclose(np.asarray(loss2), np.asarray(ref2),
                               rtol=2e-2, atol=1e-4)

    # case 3: alpha >= 1 (dedicated 1-D NLL-only kernel, no j grid/DMAs)
    loss3 = jax.block_until_ready(
        nks_summary_loss(hazards, idx_durations, events, 1.0, sigma, "mean"))
    ref3 = jax.block_until_ready(
        nks_reference(hazards, idx_durations, events, 1.0, sigma, "mean"))
    np.testing.assert_allclose(np.asarray(loss3), np.asarray(ref3),
                               rtol=2e-2, atol=1e-4)

    print("KERNEL_OK")
</pallas_src>

<mosaic_0001>
module attributes {stable_mosaic.version = 11 : i64} {
  func.func @_nks_rank_kernel(%arg0: i32, %arg1: i32, %arg2: memref<8x16xf32, #tpu.memory_space<vmem>>, %arg3: memref<8x16xf32, #tpu.memory_space<vmem>>, %arg4: memref<16x16xf32, #tpu.memory_space<vmem>>, %arg5: memref<8x1xi32, #tpu.memory_space<vmem>>, %arg6: memref<8x1xf32, #tpu.memory_space<vmem>>, %arg7: memref<1x16xi32, #tpu.memory_space<vmem>>, %arg8: memref<1x16xf32, #tpu.memory_space<vmem>>, %arg9: memref<8x128xf32, #tpu.memory_space<vmem>>, %arg10: memref<8x1xf32, #tpu.memory_space<vmem>>, %arg11: memref<8x1xf32, #tpu.memory_space<vmem>>, %arg12: memref<8x1xf32, #tpu.memory_space<vmem>>, %arg13: memref<8x1xf32, #tpu.memory_space<vmem>>, %arg14: memref<8x16xf32, #tpu.memory_space<vmem>>) attributes {dimension_semantics = [#tpu.dimension_semantics<parallel>, #tpu.dimension_semantics<arbitrary>], iteration_bounds = array<i64: 2, 1>, scalar_prefetch = 0 : i64, scratch_operands = 5 : i64, tpu.core_type = #tpu.core_type<tc>, window_params = [{transform_indices = @transform_0, window_bounds = array<i64: 8, 16>}, {transform_indices = @transform_1, window_bounds = array<i64: 8, 16>}, {transform_indices = @transform_2, window_bounds = array<i64: 16, 16>}, {transform_indices = @transform_3, window_bounds = array<i64: 8, 1>}, {transform_indices = @transform_4, window_bounds = array<i64: 8, 1>}, {transform_indices = @transform_5, window_bounds = array<i64: 1, 16>}, {transform_indices = @transform_6, window_bounds = array<i64: 1, 16>}, {transform_indices = @transform_7, window_bounds = array<i64: 8, 128>}]} {
    %c0 = arith.constant 0 : index
    %c0_0 = arith.constant 0 : index
    %0 = vector.load %arg5[%c0, %c0_0] : memref<8x1xi32, #tpu.memory_space<vmem>>, vector<8x1xi32>
    %c0_1 = arith.constant 0 : index
    %c0_2 = arith.constant 0 : index
    %1 = vector.load %arg6[%c0_1, %c0_2] : memref<8x1xf32, #tpu.memory_space<vmem>>, vector<8x1xf32>
    %c0_i32 = arith.constant 0 : i32
    %2 = arith.cmpi eq, %arg1, %c0_i32 : i32
    %3 = arith.extui %2 : i1 to i32
    %c0_i32_3 = arith.constant 0 : i32
    %4 = arith.cmpi ne, %3, %c0_i32_3 : i32
    scf.if %4 {
      %c0_24 = arith.constant 0 : index
      %c0_25 = arith.constant 0 : index
      %38 = vector.load %arg2[%c0_24, %c0_25] : memref<8x16xf32, #tpu.memory_space<vmem>>, vector<8x16xf32>
      %39 = tpu.iota {dimensions = array<i32: 1>} : vector<8x16xi32>
      %40 = vector.broadcast %0 : vector<8x1xi32> to vector<8x16xi32>
      %41 = arith.cmpi sle, %39, %40 : vector<8x16xi32>
      %42 = arith.extui %41 : vector<8x16xi1> to vector<8x16xi32>
      %43 = arith.sitofp %42 : vector<8x16xi32> to vector<8x16xf32>
      %44 = vector.broadcast %0 : vector<8x1xi32> to vector<8x16xi32>
      %45 = arith.cmpi eq, %39, %44 : vector<8x16xi32>
      %cst_26 = arith.constant 0.000000e+00 : f32
      %46 = vector.shape_cast %1 : vector<8x1xf32> to vector<8x1xf32>
      %47 = vector.broadcast %46 : vector<8x1xf32> to vector<8x16xf32>
      %48 = vector.broadcast %cst_26 : f32 to vector<8x16xf32>
      %49 = arith.select %45, %47, %48 : vector<8x16xi1>, vector<8x16xf32>
      %c0_27 = arith.constant 0 : index
      %c0_28 = arith.constant 0 : index
      %50 = vector.load %arg14[%c0_27, %c0_28] : memref<8x16xf32, #tpu.memory_space<vmem>>, vector<8x16xf32>
      tpu.vector_store %arg14[%c0_27, %c0_28], %49 {strides = array<i32>} : memref<8x16xf32, #tpu.memory_space<vmem>>, vector<8x16xf32>,
      %cst_29 = arith.constant 0.000000e+00 : f32
      %51 = vector.broadcast %cst_29 : f32 to vector<8x16xf32>
      %52 = arith.cmpf oge, %38, %51 : vector<8x16xf32>
      %cst_30 = arith.constant 1.000000e+00 : f32
      %53 = vector.broadcast %cst_30 : f32 to vector<8x16xf32>
      %54 = arith.cmpf ole, %38, %53 : vector<8x16xf32>
      %55 = arith.andi %52, %54 : vector<8x16xi1>
      %56 = arith.extui %55 : vector<8x16xi1> to vector<8x16xi32>
      %57 = arith.sitofp %56 : vector<8x16xi32> to vector<8x16xf32>
      %cst_31 = arith.constant dense<0x7F800000> : vector<8xf32>
      %58 = vector.multi_reduction <minimumf>, %57, %cst_31 [1] : vector<8x16xf32> to vector<8xf32>
      %59 = vector.shape_cast %58 : vector<8xf32> to vector<8x1xf32>
      %c0_32 = arith.constant 0 : index
      %c0_33 = arith.constant 0 : index
      %60 = vector.load %arg12[%c0_32, %c0_33] : memref<8x1xf32, #tpu.memory_space<vmem>>, vector<8x1xf32>
      tpu.vector_store %arg12[%c0_32, %c0_33], %59 {strides = array<i32>} : memref<8x1xf32, #tpu.memory_space<vmem>>, vector<8x1xf32>,
      %61 = math.log %38 : vector<8x16xf32>
      %cst_34 = arith.constant -1.000000e+02 : f32
      %62 = vector.broadcast %cst_34 : f32 to vector<8x16xf32>
      %63 = arith.maximumf %61, %62 : vector<8x16xf32>
      %cst_35 = arith.constant 1.000000e+00 : f32
      %64 = vector.broadcast %cst_35 : f32 to vector<8x16xf32>
      %65 = arith.subf %64, %38 : vector<8x16xf32>
      %66 = math.log %65 : vector<8x16xf32>
      %cst_36 = arith.constant -1.000000e+02 : f32
      %67 = vector.broadcast %cst_36 : f32 to vector<8x16xf32>
      %68 = arith.maximumf %66, %67 : vector<8x16xf32>
      %69 = arith.mulf %49, %63 : vector<8x16xf32>
      %cst_37 = arith.constant 1.000000e+00 : f32
      %70 = vector.broadcast %cst_37 : f32 to vector<8x16xf32>
      %71 = arith.subf %70, %49 : vector<8x16xf32>
      %72 = arith.mulf %71, %68 : vector<8x16xf32>
      %73 = arith.addf %69, %72 : vector<8x16xf32>
      %cst_38 = arith.constant 0.000000e+00 : f32
      %74 = vector.broadcast %cst_38 : f32 to vector<8x16xf32>
      %75 = arith.subf %74, %73 : vector<8x16xf32>
      %76 = arith.mulf %75, %43 : vector<8x16xf32>
      %cst_39 = arith.constant dense<0.000000e+00> : vector<8xf32>
      %77 = vector.multi_reduction <add>, %76, %cst_39 [1] : vector<8x16xf32> to vector<8xf32>
      %78 = vector.shape_cast %77 : vector<8xf32> to vector<8x1xf32>
      %c0_40 = arith.constant 0 : index
      %c0_41 = arith.constant 0 : index
      %79 = vector.load %arg10[%c0_40, %c0_41] : memref<8x1xf32, #tpu.memory_space<vmem>>, vector<8x1xf32>
      tpu.vector_store %arg10[%c0_40, %c0_41], %78 {strides = array<i32>} : memref<8x1xf32, #tpu.memory_space<vmem>>, vector<8x1xf32>,
      %c0_42 = arith.constant 0 : index
      %c0_43 = arith.constant 0 : index
      %80 = vector.load %arg3[%c0_42, %c0_43] : memref<8x16xf32, #tpu.memory_space<vmem>>, vector<8x16xf32>
      %81 = arith.mulf %49, %80 : vector<8x16xf32>
      %cst_44 = arith.constant dense<0.000000e+00> : vector<8xf32>
      %82 = vector.multi_reduction <add>, %81, %cst_44 [1] : vector<8x16xf32> to vector<8xf32>
      %83 = vector.shape_cast %82 : vector<8xf32> to vector<8x1xf32>
      %cst_45 = arith.constant 1.000000e+01 : f32
      %84 = vector.broadcast %cst_45 : f32 to vector<8x1xf32>
      %85 = arith.mulf %83, %84 : vector<8x1xf32>
      %c0_46 = arith.constant 0 : index
      %c0_47 = arith.constant 0 : index
      %86 = vector.load %arg11[%c0_46, %c0_47] : memref<8x1xf32, #tpu.memory_space<vmem>>, vector<8x1xf32>
      tpu.vector_store %arg11[%c0_46, %c0_47], %85 {strides = array<i32>} : memref<8x1xf32, #tpu.memory_space<vmem>>, vector<8x1xf32>,
      %cst_48 = arith.constant 0.000000e+00 : f32
      %87 = vector.broadcast %cst_48 : f32 to vector<8x1xf32>
      %c0_49 = arith.constant 0 : index
      %c0_50 = arith.constant 0 : index
      %88 = vector.load %arg13[%c0_49, %c0_50] : memref<8x1xf32, #tpu.memory_space<vmem>>, vector<8x1xf32>
      tpu.vector_store %arg13[%c0_49, %c0_50], %87 {strides = array<i32>} : memref<8x1xf32, #tpu.memory_space<vmem>>, vector<8x1xf32>,
    } else {
    }
    %c0_4 = arith.constant 0 : index
    %c0_5 = arith.constant 0 : index
    %5 = vector.load %arg14[%c0_4, %c0_5] : memref<8x16xf32, #tpu.memory_space<vmem>>, vector<8x16xf32>
    %c0_6 = arith.constant 0 : index
    %c0_7 = arith.constant 0 : index
    %6 = vector.load %arg4[%c0_6, %c0_7] : memref<16x16xf32, #tpu.memory_space<vmem>>, vector<16x16xf32>
    %cst = arith.constant dense<0.000000e+00> : vector<8x16xf32>
    %7 = tpu.matmul %5, %6, %cst {dimension_numbers = #tpu.dot_dimension_numbers<[1], [0], [0], [1], [0, 0, 1, 1], [], []>, precision = #tpu.contract_precision<fp32>} : vector<8x16xf32>, vector<16x16xf32>, vector<8x16xf32> -> vector<8x16xf32>
    %c0_8 = arith.constant 0 : index
    %c0_9 = arith.constant 0 : index
    %8 = vector.load %arg7[%c0_8, %c0_9] : memref<1x16xi32, #tpu.memory_space<vmem>>, vector<1x16xi32>
    %c0_10 = arith.constant 0 : index
    %c0_11 = arith.constant 0 : index
    %9 = vector.load %arg8[%c0_10, %c0_11] : memref<1x16xf32, #tpu.memory_space<vmem>>, vector<1x16xf32>
    %10 = vector.broadcast %0 : vector<8x1xi32> to vector<8x16xi32>
    %11 = vector.broadcast %8 : vector<1x16xi32> to vector<8x16xi32>
    %12 = arith.cmpi slt, %10, %11 : vector<8x16xi32>
    %13 = vector.broadcast %0 : vector<8x1xi32> to vector<8x16xi32>
    %14 = vector.broadcast %8 : vector<1x16xi32> to vector<8x16xi32>
    %15 = arith.cmpi eq, %13, %14 : vector<8x16xi32>
    %cst_12 = arith.constant 0.000000e+00 : f32
    %16 = vector.broadcast %cst_12 : f32 to vector<1x16xf32>
    %17 = arith.cmpf oeq, %9, %16 : vector<1x16xf32>
    %18 = vector.broadcast %17 : vector<1x16xi1> to vector<8x16xi1>
    %19 = arith.andi %15, %18 : vector<8x16xi1>
    %20 = arith.ori %12, %19 : vector<8x16xi1>
    %c0_13 = arith.constant 0 : index
    %c0_14 = arith.constant 0 : index
    %21 = vector.load %arg11[%c0_13, %c0_14] : memref<8x1xf32, #tpu.memory_space<vmem>>, vector<8x1xf32>
    %cst_15 = arith.constant 1.000000e+01 : f32
    %22 = vector.broadcast %cst_15 : f32 to vector<8x16xf32>
    %23 = arith.mulf %7, %22 : vector<8x16xf32>
    %24 = vector.broadcast %21 : vector<8x1xf32> to vector<8x16xf32>
    %25 = arith.subf %24, %23 : vector<8x16xf32>
    %26 = math.exp %25 : vector<8x16xf32>
    %c0_16 = arith.constant 0 : index
    %c0_17 = arith.constant 0 : index
    %27 = vector.load %arg13[%c0_16, %c0_17] : memref<8x1xf32, #tpu.memory_space<vmem>>, vector<8x1xf32>
    %cst_18 = arith.constant 0.000000e+00 : f32
    %28 = vector.broadcast %cst_18 : f32 to vector<8x16xf32>
    %29 = arith.select %20, %26, %28 : vector<8x16xi1>, vector<8x16xf32>
    %cst_19 = arith.constant dense<0.000000e+00> : vector<8xf32>
    %30 = vector.multi_reduction <add>, %29, %cst_19 [1] : vector<8x16xf32> to vector<8xf32>
    %31 = vector.shape_cast %30 : vector<8xf32> to vector<8x1xf32>
    %32 = arith.mulf %1, %31 : vector<8x1xf32>
    %33 = arith.addf %27, %32 : vector<8x1xf32>
    %c0_20 = arith.constant 0 : index
    %c0_21 = arith.constant 0 : index
    %34 = vector.load %arg13[%c0_20, %c0_21] : memref<8x1xf32, #tpu.memory_space<vmem>>, vector<8x1xf32>
    tpu.vector_store %arg13[%c0_20, %c0_21], %33 {strides = array<i32>} : memref<8x1xf32, #tpu.memory_space<vmem>>, vector<8x1xf32>,
    %c0_i32_22 = arith.constant 0 : i32
    %35 = arith.cmpi eq, %arg1, %c0_i32_22 : i32
    %36 = arith.extui %35 : i1 to i32
    %c0_i32_23 = arith.constant 0 : i32
    %37 = arith.cmpi ne, %36, %c0_i32_23 : i32
    scf.if %37 {
      %38 = tpu.iota {dimensions = array<i32: 1>} : vector<8x128xi32>
      %c0_i32_24 = arith.constant 0 : i32
      %39 = vector.broadcast %c0_i32_24 : i32 to vector<8x128xi32>
      %40 = arith.cmpi eq, %38, %39 : vector<8x128xi32>
      %c0_25 = arith.constant 0 : index
      %c0_26 = arith.constant 0 : index
      %41 = vector.load %arg10[%c0_25, %c0_26] : memref<8x1xf32, #tpu.memory_space<vmem>>, vector<8x1xf32>
      %c1_i32 = arith.constant 1 : i32
      %42 = vector.broadcast %c1_i32 : i32 to vector<8x128xi32>
      %43 = arith.cmpi eq, %38, %42 : vector<8x128xi32>
      %c0_27 = arith.constant 0 : index
      %c0_28 = arith.constant 0 : index
      %44 = vector.load %arg13[%c0_27, %c0_28] : memref<8x1xf32, #tpu.memory_space<vmem>>, vector<8x1xf32>
      %cst_29 = arith.constant 1.250000e-01 : f32
      %45 = vector.broadcast %cst_29 : f32 to vector<8x1xf32>
      %46 = arith.mulf %44, %45 : vector<8x1xf32>
      %c2_i32 = arith.constant 2 : i32
      %47 = vector.broadcast %c2_i32 : i32 to vector<8x128xi32>
      %48 = arith.cmpi eq, %38, %47 : vector<8x128xi32>
      %c0_30 = arith.constant 0 : index
      %c0_31 = arith.constant 0 : index
      %49 = vector.load %arg12[%c0_30, %c0_31] : memref<8x1xf32, #tpu.memory_space<vmem>>, vector<8x1xf32>
      %cst_32 = arith.constant 0.000000e+00 : f32
      %50 = vector.shape_cast %49 : vector<8x1xf32> to vector<8x1xf32>
      %51 = vector.broadcast %50 : vector<8x1xf32> to vector<8x128xf32>
      %52 = vector.broadcast %cst_32 : f32 to vector<8x128xf32>
      %53 = arith.select %48, %51, %52 : vector<8x128xi1>, vector<8x128xf32>
      %54 = vector.shape_cast %46 : vector<8x1xf32> to vector<8x1xf32>
      %55 = vector.broadcast %54 : vector<8x1xf32> to vector<8x128xf32>
      %56 = arith.select %43, %55, %53 : vector<8x128xi1>, vector<8x128xf32>
      %57 = vector.shape_cast %41 : vector<8x1xf32> to vector<8x1xf32>
      %58 = vector.broadcast %57 : vector<8x1xf32> to vector<8x128xf32>
      %59 = arith.select %40, %58, %56 : vector<8x128xi1>, vector<8x128xf32>
      %c0_33 = arith.constant 0 : index
      %c0_34 = arith.constant 0 : index
      %60 = vector.load %arg9[%c0_33, %c0_34] : memref<8x128xf32, #tpu.memory_space<vmem>>, vector<8x128xf32>
      tpu.vector_store %arg9[%c0_33, %c0_34], %59 {strides = array<i32>} : memref<8x128xf32, #tpu.memory_space<vmem>>, vector<8x128xf32>,
    } else {
    }
    return
  }
  func.func @transform_0(%arg0: i32, %arg1: i32) -> (i32, i32) {
    %c0_i32 = arith.constant 0 : i32
    %c0_i32_0 = arith.constant 0 : i32
    return %arg0, %c0_i32 : i32, i32
  }
  func.func @transform_1(%arg0: i32, %arg1: i32) -> (i32, i32) {
    %c0_i32 = arith.constant 0 : i32
    %c0_i32_0 = arith.constant 0 : i32
    return %arg0, %c0_i32 : i32, i32
  }
  func.func @transform_2(%arg0: i32, %arg1: i32) -> (i32, i32) {
    %c0_i32 = arith.constant 0 : i32
    %c0_i32_0 = arith.constant 0 : i32
    return %c0_i32, %arg1 : i32, i32
  }
  func.func @transform_3(%arg0: i32, %arg1: i32) -> (i32, i32) {
    %c0_i32 = arith.constant 0 : i32
    %c0_i32_0 = arith.constant 0 : i32
    return %arg0, %c0_i32 : i32, i32
  }
  func.func @transform_4(%arg0: i32, %arg1: i32) -> (i32, i32) {
    %c0_i32 = arith.constant 0 : i32
    %c0_i32_0 = arith.constant 0 : i32
    return %arg0, %c0_i32 : i32, i32
  }
  func.func @transform_5(%arg0: i32, %arg1: i32) -> (i32, i32) {
    %c0_i32 = arith.constant 0 : i32
    %c0_i32_0 = arith.constant 0 : i32
    return %c0_i32, %arg1 : i32, i32
  }
  func.func @transform_6(%arg0: i32, %arg1: i32) -> (i32, i32) {
    %c0_i32 = arith.constant 0 : i32
    %c0_i32_0 = arith.constant 0 : i32
    return %c0_i32, %arg1 : i32, i32
  }
  func.func @transform_7(%arg0: i32, %arg1: i32) -> (i32, i32) {
    %c0_i32 = arith.constant 0 : i32
    %c0_i32_0 = arith.constant 0 : i32
    return %arg0, %c0_i32 : i32, i32
  }
}

</mosaic_0001>

<llo_original>
// kernel: tpu_custom_call.1
$region0: #{tpu_custom_call.1}
  #allocation0 [shape = 'u32[]', space=smem, size = 0x4, offset = 0x4, fixed_abs, tag = 'smem constant byte address 0x4 - core index']
  #allocation1 [shape = 'u32[144,128]{1,0:T(1,128)}', space=vmem, size = 0x12000, scoped, tag = 'internal scratch']
  #allocation2 [shape = 'f32[8,1]{1,0:T(8,128)}', space=vmem, size = 0x1000, scoped, tag = 'scratch operand']
  #allocation3 [shape = 'f32[8,1]{1,0:T(8,128)}', space=vmem, size = 0x1000, scoped, tag = 'scratch operand']
  #allocation4 [shape = 'f32[8,1]{1,0:T(8,128)}', space=vmem, size = 0x1000, scoped, tag = 'scratch operand']
  #allocation5 [shape = 'f32[8,1]{1,0:T(8,128)}', space=vmem, size = 0x1000, scoped, tag = 'scratch operand']
  #allocation6 [shape = 'f32[8,16]{1,0:T(8,128)}', space=vmem, size = 0x1000, scoped, tag = 'scratch operand']
  %s0 = inlined_call_operand.vmem [shape: f32[16,16], index: 0, kind: input, shape index: {}]
  %s1 = inlined_call_operand.vmem [shape: f32[16,16], index: 1, kind: input, shape index: {}]
  %s2 = inlined_call_operand.hbm [shape: f32[16,16], index: 2, kind: input, shape index: {}]
  %s3 = inlined_call_operand.vmem [shape: s32[16,1], index: 3, kind: input, shape index: {}]
  %s4 = inlined_call_operand.vmem [shape: f32[16,1], index: 4, kind: input, shape index: {}]
  %s5 = inlined_call_operand.vmem [shape: s32[1,16], index: 5, kind: input, shape index: {}]
  %s6 = inlined_call_operand.vmem [shape: f32[1,16], index: 6, kind: input, shape index: {}]
  %s7 = inlined_call_operand.hbm [shape: f32[16,128], index: 7, kind: output, shape index: {}]
  %s8 = sld [smem:[#allocation0]]
  $region73: #{tpu_custom_call.1} parent=0
    _
  %s10 = ssub.s32 1, %s8
  %s11 = scalar_select 0, %s10, %s8
  $region1: #{tpu_custom_call.1} parent=0
    #allocation7 [shape = 'u8[8192]{0}', space=vmem, size = 0x2000, scoped, tag = 'input window, operand 2, single buffered']
    #allocation8 [shape = 's32[2]{0}', space=sflag, size = 0x8, scoped, tag = 'scoped memory for tpu_custom_call.1']
    #allocation9 [shape = 's32[2]{0}', space=sflag, size = 0x8, scoped, tag = 'scoped memory for tpu_custom_call.1']
    #allocation10 [shape = 'u8[8192]{0}', space=vmem, size = 0x2000, scoped, tag = 'output window, operand 0']
    %12 = vsyncpa [#allocation8], 0
    %13 = vsyncpa [#allocation9], 0
    %s14 = scalar_lea.sflag [#allocation9], 1
    %15 = vsyncpa %s14, 0
    loop: start=0, step=1, limit=4
    $region2: #{tpu_custom_call.1} parent=1 // loop_pre_header
      _
    $region3: #{tpu_custom_call.1} parent=1 // loop_header
      %s17 = sphi 0, %s21
      %p18 = scmp.ge.s32.totalorder %s17, 4
      %s24 = sphi 0, %s36
      %s25 = sphi 0, %s32
      %s26 = sphi 0, %s24
      %s27 = sphi 0, %s25
      %s28 = sphi 0, %s26
      %s29 = sphi 0, %s27
      %s39 = sphi 0, %s41
      %s42 = sphi 0, %s39
      %s43 = sphi 0, %s42
      %s59 = sphi 0, %s43
      %s65 = sphi 0, %s67
      %s68 = sphi 0, %s65
      %s69 = sphi 0, %s68
      %s85 = sphi 0, %s69
      %s91 = sphi 0, %s93
      %s94 = sphi 0, %s91
      %s95 = sphi 0, %s94
      %s111 = sphi 0, %s95
      %s117 = sphi 0, %s119
      %s120 = sphi 0, %s117
      %s121 = sphi 0, %s120
      %s137 = sphi 0, %s121
      %s143 = sphi 0, %s145
      %s146 = sphi 0, %s143
      %s147 = sphi 0, %s146
      %s163 = sphi 0, %s147
      %s169 = sphi 0, %s171
      %s172 = sphi 0, %s169
      %s173 = sphi 0, %s172
      %s189 = sphi 0, %s173
      %s195 = sphi 0, %s197
      %s198 = sphi 0, %s195
      %s199 = sphi 0, %s198
      %s215 = sphi 0, %s199
      %s221 = sphi 0, %s223
      %s224 = sphi 0, %s221
      %s225 = sphi 0, %s224
      %s241 = sphi 0, %s225
    $region4: #{tpu_custom_call.1} parent=1 // loop_header_branch
      %20 = sbr.rel (%p18) target = $region8
    $region5: #{tpu_custom_call.1} parent=1 // loop_body
      %s22 = ssub.s32 %s17, 1
      %s23 = ssub.s32 %s17, 2
      %s30 = sadd.s32 1, %s25
      %p31 = scmp.ge.s32.totalorder %s30, 1
      %s32 = scalar_select %p31, 0, %s30
      %s33 = sadd.s32 1, %s24
      %s34 = scalar_select %p31, %s33, %s24
      %p35 = scmp.ge.s32.totalorder %s34, 2
      %s36 = scalar_select %p35, 0, %s34
      %s37 = ssub.s32 %s24, %s36
      %p38 = scmp.eq.s32.totalorder %s37, 0
      %s40 = sadd.s32 %s39, 1
      %s41 = scalar_select %p38, %s39, %s40
      %p44 = pneg %p38
      %p45 = scmp.eq.s32.totalorder %s17, 1
      %p46 = por %p44, %p45
      %p47 = scmp.ne.s32.totalorder %s39, %s42
      %p48 = scmp.eq.s32.totalorder %s17, 0
      %p49 = por %p47, %p48
      %p50 = scmp.ne.s32.totalorder %s39, %s42
      %p51 = scmp.eq.s32.totalorder %s22, 1
      %p52 = por %p50, %p51
      %p53 = scmp.ne.s32.totalorder %s42, %s43
      %p54 = scmp.eq.s32.totalorder %s22, 0
      %p55 = por %p53, %p54
      %p56 = scmp.ne.s32.totalorder %s42, %s43
      %p57 = scmp.eq.s32.totalorder %s23, 1
      %p58 = por %p56, %p57
      %p60 = scmp.ne.s32.totalorder %s43, %s59
      %p61 = scmp.eq.s32.totalorder %s23, 0
      %p62 = por %p60, %p61
      %s63 = ssub.s32 %s24, %s36
      %p64 = scmp.eq.s32.totalorder %s63, 0
      %s66 = sadd.s32 %s65, 1
      %s67 = scalar_select %p64, %s65, %s66
      %p70 = pneg %p64
      %p71 = scmp.eq.s32.totalorder %s17, 1
      %p72 = por %p70, %p71
      %p73 = scmp.ne.s32.totalorder %s65, %s68
      %p74 = scmp.eq.s32.totalorder %s17, 0
      %p75 = por %p73, %p74
      %p76 = scmp.ne.s32.totalorder %s65, %s68
      %p77 = scmp.eq.s32.totalorder %s22, 1
      %p78 = por %p76, %p77
      %p79 = scmp.ne.s32.totalorder %s68, %s69
      %p80 = scmp.eq.s32.totalorder %s22, 0
      %p81 = por %p79, %p80
      %p82 = scmp.ne.s32.totalorder %s68, %s69
      %p83 = scmp.eq.s32.totalorder %s23, 1
      %p84 = por %p82, %p83
      %p86 = scmp.ne.s32.totalorder %s69, %s85
      %p87 = scmp.eq.s32.totalorder %s23, 0
      %p88 = por %p86, %p87
      %s89 = ssub.s32 %s25, %s32
      %p90 = scmp.eq.s32.totalorder %s89, 0
      %s92 = sadd.s32 %s91, 1
      %s93 = scalar_select %p90, %s91, %s92
      %p96 = pneg %p90
      %p97 = scmp.eq.s32.totalorder %s17, 1
      %p98 = por %p96, %p97
      %p99 = scmp.ne.s32.totalorder %s91, %s94
      %p100 = scmp.eq.s32.totalorder %s17, 0
      %p101 = por %p99, %p100
      %p102 = scmp.ne.s32.totalorder %s91, %s94
      %p103 = scmp.eq.s32.totalorder %s22, 1
      %p104 = por %p102, %p103
      %p105 = scmp.ne.s32.totalorder %s94, %s95
      %p106 = scmp.eq.s32.totalorder %s22, 0
      %p107 = por %p105, %p106
      %p108 = scmp.ne.s32.totalorder %s94, %s95
      %p109 = scmp.eq.s32.totalorder %s23, 1
      %p110 = por %p108, %p109
      %p112 = scmp.ne.s32.totalorder %s95, %s111
      %p113 = scmp.eq.s32.totalorder %s23, 0
      %p114 = por %p112, %p113
      %s115 = ssub.s32 %s24, %s36
      %p116 = scmp.eq.s32.totalorder %s115, 0
      %s118 = sadd.s32 %s117, 1
      %s119 = scalar_select %p116, %s117, %s118
      %p122 = pneg %p116
      %p123 = scmp.eq.s32.totalorder %s17, 1
      %p124 = por %p122, %p123
      %p125 = scmp.ne.s32.totalorder %s117, %s120
      %p126 = scmp.eq.s32.totalorder %s17, 0
      %p127 = por %p125, %p126
      %p128 = scmp.ne.s32.totalorder %s117, %s120
      %p129 = scmp.eq.s32.totalorder %s22, 1
      %p130 = por %p128, %p129
      %p131 = scmp.ne.s32.totalorder %s120, %s121
      %p132 = scmp.eq.s32.totalorder %s22, 0
      %p133 = por %p131, %p132
      %p134 = scmp.ne.s32.totalorder %s120, %s121
      %p135 = scmp.eq.s32.totalorder %s23, 1
      %p136 = por %p134, %p135
      %p138 = scmp.ne.s32.totalorder %s121, %s137
      %p139 = scmp.eq.s32.totalorder %s23, 0
      %p140 = por %p138, %p139
      %s141 = ssub.s32 %s24, %s36
      %p142 = scmp.eq.s32.totalorder %s141, 0
      %s144 = sadd.s32 %s143, 1
      %s145 = scalar_select %p142, %s143, %s144
      %p148 = pneg %p142
      %p149 = scmp.eq.s32.totalorder %s17, 1
      %p150 = por %p148, %p149
      %p151 = scmp.ne.s32.totalorder %s143, %s146
      %p152 = scmp.eq.s32.totalorder %s17, 0
      %p153 = por %p151, %p152
      %p154 = scmp.ne.s32.totalorder %s143, %s146
      %p155 = scmp.eq.s32.totalorder %s22, 1
      %p156 = por %p154, %p155
      %p157 = scmp.ne.s32.totalorder %s146, %s147
      %p158 = scmp.eq.s32.totalorder %s22, 0
      %p159 = por %p157, %p158
      %p160 = scmp.ne.s32.totalorder %s146, %s147
      %p161 = scmp.eq.s32.totalorder %s23, 1
      %p162 = por %p160, %p161
      %p164 = scmp.ne.s32.totalorder %s147, %s163
      %p165 = scmp.eq.s32.totalorder %s23, 0
      %p166 = por %p164, %p165
      %s167 = ssub.s32 %s25, %s32
      %p168 = scmp.eq.s32.totalorder %s167, 0
      %s170 = sadd.s32 %s169, 1
      %s171 = scalar_select %p168, %s169, %s170
      %p174 = pneg %p168
      %p175 = scmp.eq.s32.totalorder %s17, 1
      %p176 = por %p174, %p175
      %p177 = scmp.ne.s32.totalorder %s169, %s172
      %p178 = scmp.eq.s32.totalorder %s17, 0
      %p179 = por %p177, %p178
      %p180 = scmp.ne.s32.totalorder %s169, %s172
      %p181 = scmp.eq.s32.totalorder %s22, 1
      %p182 = por %p180, %p181
      %p183 = scmp.ne.s32.totalorder %s172, %s173
      %p184 = scmp.eq.s32.totalorder %s22, 0
      %p185 = por %p183, %p184
      %p186 = scmp.ne.s32.totalorder %s172, %s173
      %p187 = scmp.eq.s32.totalorder %s23, 1
      %p188 = por %p186, %p187
      %p190 = scmp.ne.s32.totalorder %s173, %s189
      %p191 = scmp.eq.s32.totalorder %s23, 0
      %p192 = por %p190, %p191
      %s193 = ssub.s32 %s25, %s32
      %p194 = scmp.eq.s32.totalorder %s193, 0
      %s196 = sadd.s32 %s195, 1
      %s197 = scalar_select %p194, %s195, %s196
      %p200 = pneg %p194
      %p201 = scmp.eq.s32.totalorder %s17, 1
      %p202 = por %p200, %p201
      %p203 = scmp.ne.s32.totalorder %s195, %s198
      %p204 = scmp.eq.s32.totalorder %s17, 0
      %p205 = por %p203, %p204
      %p206 = scmp.ne.s32.totalorder %s195, %s198
      %p207 = scmp.eq.s32.totalorder %s22, 1
      %p208 = por %p206, %p207
      %p209 = scmp.ne.s32.totalorder %s198, %s199
      %p210 = scmp.eq.s32.totalorder %s22, 0
      %p211 = por %p209, %p210
      %p212 = scmp.ne.s32.totalorder %s198, %s199
      %p213 = scmp.eq.s32.totalorder %s23, 1
      %p214 = por %p212, %p213
      %p216 = scmp.ne.s32.totalorder %s199, %s215
      %p217 = scmp.eq.s32.totalorder %s23, 0
      %p218 = por %p216, %p217
      %s219 = ssub.s32 %s24, %s36
      %p220 = scmp.eq.s32.totalorder %s219, 0
      %s222 = sadd.s32 %s221, 1
      %s223 = scalar_select %p220, %s221, %s222
      %p226 = pneg %p220
      %p227 = scmp.eq.s32.totalorder %s17, 1
      %p228 = por %p226, %p227
      %p229 = scmp.ne.s32.totalorder %s221, %s224
      %p230 = scmp.eq.s32.totalorder %s17, 0
      %p231 = por %p229, %p230
      %p232 = scmp.ne.s32.totalorder %s221, %s224
      %p233 = scmp.eq.s32.totalorder %s22, 1
      %p234 = por %p232, %p233
      %p235 = scmp.ne.s32.totalorder %s224, %s225
      %p236 = scmp.eq.s32.totalorder %s22, 0
      %p237 = por %p235, %p236
      %p238 = scmp.ne.s32.totalorder %s224, %s225
      %p239 = scmp.eq.s32.totalorder %s23, 1
      %p240 = por %p238, %p239
      %p242 = scmp.ne.s32.totalorder %s225, %s241
      %p243 = scmp.eq.s32.totalorder %s23, 0
      %p244 = por %p242, %p243
      %p245 = scmp.le.s32.totalorder 1, %s17
      %p246 = scmp.lt.s32.totalorder %s17, 3
      %p247 = pnand %p245, %p246
      %p248 = pneg %p247
      // Predicated region
      $region9: #{tpu_custom_call.1} parent=5 // pred_check
        _
      $region10: #{tpu_custom_call.1} parent=5 // pred_check_branch
        %250 = sbr.rel (%p247) target = $region12
      $region11: #{tpu_custom_call.1} parent=5 // pred_region
        %s251 = ssub.s32 %s17, 1
        // Predicated region
        $region13: #{tpu_custom_call.1} parent=11 // pred_check
          %p252 = pneg %p107
        $region14: #{tpu_custom_call.1} parent=11 // pred_check_branch
          %254 = sbr.rel (%p252) target = $region16
        $region15: #{tpu_custom_call.1} parent=11 // pred_region
          %s256 = ssub.s32 256, 256
          %257 = vsyncadd [#allocation8], %s256
          %s258 = smul.addr %s27, 128
          %s259 = scalar_lea.hbm %s2, %s258
          %s260 = sshll.u32 [#allocation7], 4
          %s261 = int_to_ptr.vmem [resolvable:$true] %s260
          %266 = dma.hbm_to_vmem [thread:$0]  %s259, 256, %s261, [#allocation8], 128, 128, 8
        $region16: #{tpu_custom_call.1} parent=11 // pred_fallthru
          _
        // Predicated region
        $region17: #{tpu_custom_call.1} parent=11 // pred_check
          %p267 = pneg %p185
        $region18: #{tpu_custom_call.1} parent=11 // pred_check_branch
          %269 = sbr.rel (%p267) target = $region20
        $region19: #{tpu_custom_call.1} parent=11 // pred_region
          %p270 = scmp.lt.s32.totalorder %s27, 0
          %s271 = scalar_select %p270, %s27, 0
          %s272 = scalar_lea.vmem %s5, %s271
        $region20: #{tpu_custom_call.1} parent=11 // pred_fallthru
          _
        // Predicated region
        $region21: #{tpu_custom_call.1} parent=11 // pred_check
          %p273 = pneg %p211
        $region22: #{tpu_custom_call.1} parent=11 // pred_check_branch
          %275 = sbr.rel (%p273) target = $region24
        $region23: #{tpu_custom_call.1} parent=11 // pred_region
          %p276 = scmp.lt.s32.totalorder %s27, 0
          %s277 = scalar_select %p276, %s27, 0
          %s278 = scalar_lea.vmem %s6, %s277
        $region24: #{tpu_custom_call.1} parent=11 // pred_fallthru
          _
      $region12: #{tpu_custom_call.1} parent=5 // pred_fallthru
        _
      %p279 = scmp.lt.s32.totalorder %s17, 2
      // Predicated region
      $region25: #{tpu_custom_call.1} parent=5 // pred_check
        %p280 = pneg %p279
      $region26: #{tpu_custom_call.1} parent=5 // pred_check_branch
        %282 = sbr.rel (%p280) target = $region28
      $region27: #{tpu_custom_call.1} parent=5 // pred_region
        // Predicated region
        $region29: #{tpu_custom_call.1} parent=27 // pred_check
          %p283 = pneg %p49
        $region30: #{tpu_custom_call.1} parent=27 // pred_check_branch
          %285 = sbr.rel (%p283) target = $region32
        $region31: #{tpu_custom_call.1} parent=27 // pred_region
          %p286 = scmp.lt.s32.totalorder %s24, 1
          %s287 = scalar_select %p286, %s24, 1
          %s288 = smul.addr %s287, 8
          %s289 = scalar_lea.vmem %s0, %s288
        $region32: #{tpu_custom_call.1} parent=27 // pred_fallthru
          _
        // Predicated region
        $region33: #{tpu_custom_call.1} parent=27 // pred_check
          %p290 = pneg %p75
        $region34: #{tpu_custom_call.1} parent=27 // pred_check_branch
          %292 = sbr.rel (%p290) target = $region36
        $region35: #{tpu_custom_call.1} parent=27 // pred_region
          %p293 = scmp.lt.s32.totalorder %s24, 1
          %s294 = scalar_select %p293, %s24, 1
          %s295 = smul.addr %s294, 8
          %s296 = scalar_lea.vmem %s1, %s295
        $region36: #{tpu_custom_call.1} parent=27 // pred_fallthru
          _
        // Predicated region
        $region37: #{tpu_custom_call.1} parent=27 // pred_check
          %p297 = pneg %p127
        $region38: #{tpu_custom_call.1} parent=27 // pred_check_branch
          %299 = sbr.rel (%p297) target = $region40
        $region39: #{tpu_custom_call.1} parent=27 // pred_region
          %p300 = scmp.lt.s32.totalorder %s24, 1
          %s301 = scalar_select %p300, %s24, 1
          %s302 = smul.addr %s301, 8
          %s303 = scalar_lea.vmem %s3, %s302
        $region40: #{tpu_custom_call.1} parent=27 // pred_fallthru
          _
        // Predicated region
        $region41: #{tpu_custom_call.1} parent=27 // pred_check
          %p304 = pneg %p153
        $region42: #{tpu_custom_call.1} parent=27 // pred_check_branch
          %306 = sbr.rel (%p304) target = $region44
        $region43: #{tpu_custom_call.1} parent=27 // pred_region
          %p307 = scmp.lt.s32.totalorder %s24, 1
          %s308 = scalar_select %p307, %s24, 1
          %s309 = smul.addr %s308, 8
          %s310 = scalar_lea.vmem %s4, %s309
        $region44: #{tpu_custom_call.1} parent=27 // pred_fallthru
          _
      $region28: #{tpu_custom_call.1} parent=5 // pred_fallthru
        _
      %p311 = scmp.le.s32.totalorder 1, %s17
      %p312 = scmp.lt.s32.totalorder %s17, 3
      %p313 = pnand %p311, %p312
      %p314 = pneg %p313
      // Predicated region
      $region45: #{tpu_custom_call.1} parent=5 // pred_check
        _
      $region46: #{tpu_custom_call.1} parent=5 // pred_check_branch
        %316 = sbr.rel (%p313) target = $region48
      $region47: #{tpu_custom_call.1} parent=5 // pred_region
        %s317 = ssub.s32 %s17, 1
        // Predicated region
        $region49: #{tpu_custom_call.1} parent=47 // pred_check
          %p318 = pneg %p107
        $region50: #{tpu_custom_call.1} parent=47 // pred_check_branch
          %320 = sbr.rel (%p318) target = $region52
        $region51: #{tpu_custom_call.1} parent=47 // pred_region
          %321 = dma.done [#allocation8], 256
        $region52: #{tpu_custom_call.1} parent=47 // pred_fallthru
          _
        %p322 = scmp.lt.s32.totalorder %s26, 1
        %s323 = scalar_select %p322, %s26, 1
        %s324 = smul.addr %s323, 8
        %s325 = scalar_lea.vmem %s0, %s324
        %p326 = pneg %p55
        %p327 = pneg %p52
        %p328 = scmp.lt.s32.totalorder %s26, 1
        %s329 = scalar_select %p328, %s26, 1
        %s330 = smul.addr %s329, 8
        %s331 = scalar_lea.vmem %s1, %s330
        %p332 = pneg %p81
        %p333 = pneg %p78
        %p334 = pneg %p107
        %p335 = pneg %p104
        %p336 = scmp.lt.s32.totalorder %s26, 1
        %s337 = scalar_select %p336, %s26, 1
        %s338 = smul.addr %s337, 8
        %s339 = scalar_lea.vmem %s3, %s338
        %p340 = pneg %p133
        %p341 = pneg %p130
        %p342 = scmp.lt.s32.totalorder %s26, 1
        %s343 = scalar_select %p342, %s26, 1
        %s344 = smul.addr %s343, 8
        %s345 = scalar_lea.vmem %s4, %s344
        %p346 = pneg %p159
        %p347 = pneg %p156
        %p348 = scmp.lt.s32.totalorder %s27, 0
        %s349 = scalar_select %p348, %s27, 0
        %s350 = scalar_lea.vmem %s5, %s349
        %p351 = pneg %p185
        %p352 = pneg %p182
        %p353 = scmp.lt.s32.totalorder %s27, 0
        %s354 = scalar_select %p353, %s27, 0
        %s355 = scalar_lea.vmem %s6, %s354
        %p356 = pneg %p211
        %p357 = pneg %p208
        %p358 = pneg %p237
        %p359 = pneg %p234
        %s360 = sand.u32 %s224, 1
        %s361 = scalar_lea.sflag [#allocation9], %s360
        %s362 = sand.u32 %s224, 1
        %s363 = smul.addr %s362, 8
        %s364 = scalar_lea.vmem [#allocation10], %s363
        %p365 = scmp.lt.s32.totalorder %s26, 1
        %s366 = scalar_select %p365, %s26, 1
        %s367 = smul.addr %s366, 8
        %s368 = scalar_lea.vmem %s0, %s367
        %p369 = scmp.lt.s32.totalorder %s26, 1
        %s370 = scalar_select %p369, %s26, 1
        %s371 = smul.addr %s370, 8
        %s372 = scalar_lea.vmem %s1, %s371
        %p373 = scmp.lt.s32.totalorder %s26, 1
        %s374 = scalar_select %p373, %s26, 1
        %s375 = smul.addr %s374, 8
        %s376 = scalar_lea.vmem %s3, %s375
        %p377 = scmp.lt.s32.totalorder %s26, 1
        %s378 = scalar_select %p377, %s26, 1
        %s379 = smul.addr %s378, 8
        %s380 = scalar_lea.vmem %s4, %s379
        %p381 = scmp.lt.s32.totalorder %s27, 0
        %s382 = scalar_select %p381, %s27, 0
        %s383 = scalar_lea.vmem %s5, %s382
        %p384 = scmp.lt.s32.totalorder %s27, 0
        %s385 = scalar_select %p384, %s27, 0
        %s386 = scalar_lea.vmem %s6, %s385
        %v387 = vld [vmem:[%s376] sm:$0xff]
        %v388 = vld [vmem:[%s380] sm:$0xff]
        %p389 = scmp.eq.s32.totalorder %s27, 0
        // Predicated region
        $region53: #{tpu_custom_call.1} parent=47 // pred_check
          %p390 = pneg %p389
        $region54: #{tpu_custom_call.1} parent=47 // pred_check_branch
          %392 = sbr.rel (%p390) target = $region56
        $region55: #{tpu_custom_call.1} parent=47 // pred_region
          %v393 = vld [vmem:[%s368] sm:$0xff]
          %v394 = vlaneseq
          %v395 = vand.u32 %v394, 127
          %396 = vset.pattern.permute.xlu0 0
          %397 = vperm.xlu0 %396, %v387
          %v398 = vpop.permute.xlu0 %397
          %vm399 = vcmp.le.s32.totalorder %v395, %v398
          %v400 = vsel %vm399, 1, 0
          %v401 = vcvt.s32.f32 %v400
          %vm402 = vcmp.eq.s32.totalorder %v395, %v398
          %404 = vset.pattern.permute.xlu0 0
          %405 = vperm.xlu0 %404, %v388
          %v406 = vpop.permute.xlu0 %405
          %v408 = vsel %vm402, %v406, 0.0
          %vm409 = vcmask 130048
          %410 = vst.msk [vmem:[#allocation6] sm:$0xff] %vm409, %v408
          %vm411 = vcmp.ge.f32.partialorder %v393, 0.0
          %vm412 = vcmp.le.f32.partialorder %v393, 1.0
          %vm413 = vmand %vm411, %vm412
          %v414 = vsel %vm413, 1, 0
          %v415 = vcvt.s32.f32 %v414
          %v416 = vsel %vm409, %v415, inf
          %417 = vmin.xlane.f32.xlu0 %v416
          %v418 = vpop.xlane.xlu0 %417
          %vm419 = vcmask 7168
          %420 = vst.msk [vmem:[#allocation4] sm:$0xff] %vm419, %v418
          %v421 = vlog2.pop %v393
          %v422 = vmul.f32 %v421, 0.6931472
          %v423 = vmax.f32 %v422, -100.0
          %v424 = vsub.f32 1.0, %v393
          %v425 = vlog2.pop %v424
          %v426 = vmul.f32 %v425, 0.6931472
          %v427 = vmax.f32 %v426, -100.0
          %v428 = vmul.f32 %v408, %v423
          %v429 = vsub.f32 1.0, %v408
          %v430 = vmul.f32 %v429, %v427
          %v431 = vadd.f32 %v428, %v430
          %v432 = vsub.f32 0.0, %v431
          %v433 = vmul.f32 %v432, %v401
          %v434 = vsel %vm409, %v433, 0.0
          %435 = vadd.xlane.f32.xlu0 %v434
          %v436 = vpop.xlane.xlu0 %435
          %437 = vst.msk [vmem:[#allocation2] sm:$0xff] %vm419, %v436
          %v438 = vld [vmem:[%s372] sm:$0xff]
          %v439 = vmul.f32 %v408, %v438
          %v440 = vsel %vm409, %v439, 0.0
          %441 = vadd.xlane.f32.xlu0 %v440
          %v442 = vpop.xlane.xlu0 %441
          %v443 = vmul.f32 %v442, 10.0
          %444 = vst.msk [vmem:[#allocation3] sm:$0xff] %vm419, %v443
          %445 = vst.msk [vmem:[#allocation5] sm:$0xff] %vm419, 0.0
        $region56: #{tpu_custom_call.1} parent=47 // pred_fallthru
          _
        %v446 = vld [vmem:[#allocation6] sm:$0xff]
        %v447 = vld [vmem:[#allocation7] sm:$0xff]
        %v448 = vld [vmem:[#allocation7 + $0x8] sm:$0xff]
        %vm449 = vcmask 130048
        %v451 = vsel %vm449, %v446, 0
        %453 = vmatprep.subr.mxu0 0.0
        %v454 = vand.u32 %v447, 4294901760
        %455 = vmatpush1.msra.mxu0 %v454
        %456 = vmatprep.subr.mxu0 0.0
        %v457 = vand.u32 %v448, 4294901760
        %458 = vmatpush1.msra.mxu0 %v457
        %459 = vmatprep.subr.mxu0 0.0
        %460 = vmatpush1.msra.mxu0 0.0
        %461 = vmatprep.subr.mxu0 0.0
        %462 = vmatpush1.msra.mxu0 0.0
        %463 = vmatprep.subr.mxu0 0.0
        %464 = vmatpush1.msra.mxu0 0.0
        %465 = vmatprep.subr.mxu0 0.0
        %466 = vmatpush1.msra.mxu0 0.0
        %467 = vmatprep.subr.mxu0 0.0
        %468 = vmatpush1.msra.mxu0 0.0
        %469 = vmatprep.subr.mxu0 0.0
        %470 = vmatpush1.msra.mxu0 0.0
        %471 = vmatprep.subr.mxu0 0.0
        %472 = vmatpush1.msra.mxu0 0.0
        %473 = vmatprep.subr.mxu0 0.0
        %474 = vmatpush1.msra.mxu0 0.0
        %475 = vmatprep.subr.mxu0 0.0
        %476 = vmatpush1.msra.mxu0 0.0
        %477 = vmatprep.subr.mxu0 0.0
        %478 = vmatpush1.msra.mxu0 0.0
        %479 = vmatprep.subr.mxu0 0.0
        %480 = vmatpush1.msra.mxu0 0.0
        %481 = vmatprep.subr.mxu0 0.0
        %482 = vmatpush1.msra.mxu0 0.0
        %483 = vmatprep.subr.mxu0 0.0
        %484 = vmatpush1.msra.mxu0 0.0
        %485 = vmatprep.subr.mxu0 0.0
        %486 = vmatpush1.msra.mxu0 0.0
        %487 = vmatprep.subr.mxu0 0.0
        %488 = vmatpush1.msra.mxu0 0.0
        %489 = vmatprep.subr.mxu0 0.0
        %490 = vmatpush1.msra.mxu0 0.0
        %491 = vmatprep.subr.mxu0 0.0
        %492 = vmatpush1.msra.mxu0 0.0
        %493 = vmatprep.subr.mxu0 0.0
        %494 = vmatpush1.msra.mxu0 0.0
        %495 = vmatprep.subr.mxu0 0.0
        %496 = vmatpush1.msra.mxu0 0.0
        %497 = vmatprep.subr.mxu0 0.0
        %498 = vmatpush1.msra.mxu0 0.0
        %499 = vmatprep.subr.mxu0 0.0
        %500 = vmatpush1.msra.mxu0 0.0
        %501 = vmatprep.subr.mxu0 0.0
        %502 = vmatpush1.msra.mxu0 0.0
        %503 = vmatprep.subr.mxu0 0.0
        %504 = vmatpush1.msra.mxu0 0.0
        %505 = vmatprep.subr.mxu0 0.0
        %506 = vmatpush1.msra.mxu0 0.0
        %507 = vmatprep.subr.mxu0 0.0
        %508 = vmatpush1.msra.mxu0 0.0
        %509 = vmatprep.subr.mxu0 0.0
        %510 = vmatpush1.msra.mxu0 0.0
        %511 = vmatprep.subr.mxu0 0.0
        %512 = vmatpush1.msra.mxu0 0.0
        %513 = vmatprep.subr.mxu0 0.0
        %514 = vmatpush1.msra.mxu0 0.0
        %515 = vmatprep.subr.mxu0 0.0
        %516 = vmatpush1.msra.mxu0 0.0
        %517 = vmatprep.subr.mxu0 0.0
        %518 = vmatpush1.msra.mxu0 0.0
        %519 = vmatprep.mubr.f32.mxu0 0.0
        %v520 = vand.u32 %v451, 4294901760
        %v521 = vsub.f32 %v451, %v520
        %v522 = vand.u32 %v521, 4294901760
        %v523 = vsub.f32 %v521, %v522
        %v524 = vand.u32 %v523, 4294901760
        %525 = vmatmul.mubr.f32.gmra.mrb[0].mxu0 %v524
        %v526 = vpop.f32.mrb[0].mxu0
        %v527 = vadd.f32 0.0, %v526
        %v528 = vpop.f32.mrb[0].mxu0
        %529 = vdwg.mxu0
        %530 = vmatprep.subr.mxu0 0.0
        %v531 = vand.u32 %v447, 4294901760
        %v532 = vsub.f32 %v447, %v531
        %v533 = vand.u32 %v532, 4294901760
        %v534 = vsub.f32 %v532, %v533
        %v535 = vand.u32 %v534, 4294901760
        %536 = vmatpush1.msra.mxu0 %v535
        %537 = vmatprep.subr.mxu0 0.0
        %v538 = vand.u32 %v448, 4294901760
        %v539 = vsub.f32 %v448, %v538
        %v540 = vand.u32 %v539, 4294901760
        %v541 = vsub.f32 %v539, %v540
        %v542 = vand.u32 %v541, 4294901760
        %543 = vmatpush1.msra.mxu0 %v542
        %544 = vmatprep.subr.mxu0 0.0
        %545 = vmatpush1.msra.mxu0 0.0
        %546 = vmatprep.subr.mxu0 0.0
        %547 = vmatpush1.msra.mxu0 0.0
        %548 = vmatprep.subr.mxu0 0.0
        %549 = vmatpush1.msra.mxu0 0.0
        %550 = vmatprep.subr.mxu0 0.0
        %551 = vmatpush1.msra.mxu0 0.0
        %552 = vmatprep.subr.mxu0 0.0
        %553 = vmatpush1.msra.mxu0 0.0
        %554 = vmatprep.subr.mxu0 0.0
        %555 = vmatpush1.msra.mxu0 0.0
        %556 = vmatprep.subr.mxu0 0.0
        %557 = vmatpush1.msra.mxu0 0.0
        %558 = vmatprep.subr.mxu0 0.0
        %559 = vmatpush1.msra.mxu0 0.0
        %560 = vmatprep.subr.mxu0 0.0
        %561 = vmatpush1.msra.mxu0 0.0
        %562 = vmatprep.subr.mxu0 0.0
        %563 = vmatpush1.msra.mxu0 0.0
        %564 = vmatprep.subr.mxu0 0.0
        %565 = vmatpush1.msra.mxu0 0.0
        %566 = vmatprep.subr.mxu0 0.0
        %567 = vmatpush1.msra.mxu0 0.0
        %568 = vmatprep.subr.mxu0 0.0
        %569 = vmatpush1.msra.mxu0 0.0
        %570 = vmatprep.subr.mxu0 0.0
        %571 = vmatpush1.msra.mxu0 0.0
        %572 = vmatprep.subr.mxu0 0.0
        %573 = vmatpush1.msra.mxu0 0.0
        %574 = vmatprep.subr.mxu0 0.0
        %575 = vmatpush1.msra.mxu0 0.0
        %576 = vmatprep.subr.mxu0 0.0
        %577 = vmatpush1.msra.mxu0 0.0
        %578 = vmatprep.subr.mxu0 0.0
        %579 = vmatpush1.msra.mxu0 0.0
        %580 = vmatprep.subr.mxu0 0.0
        %581 = vmatpush1.msra.mxu0 0.0
        %582 = vmatprep.subr.mxu0 0.0
        %583 = vmatpush1.msra.mxu0 0.0
        %584 = vmatprep.subr.mxu0 0.0
        %585 = vmatpush1.msra.mxu0 0.0
        %586 = vmatprep.subr.mxu0 0.0
        %587 = vmatpush1.msra.mxu0 0.0
        %588 = vmatprep.subr.mxu0 0.0
        %589 = vmatpush1.msra.mxu0 0.0
        %590 = vmatprep.subr.mxu0 0.0
        %591 = vmatpush1.msra.mxu0 0.0
        %592 = vmatprep.subr.mxu0 0.0
        %593 = vmatpush1.msra.mxu0 0.0
        %594 = vmatprep.subr.mxu0 0.0
        %595 = vmatpush1.msra.mxu0 0.0
        %596 = vmatprep.subr.mxu0 0.0
        %597 = vmatpush1.msra.mxu0 0.0
        %598 = vmatprep.subr.mxu0 0.0
        %599 = vmatpush1.msra.mxu0 0.0
        %600 = vmatprep.subr.mxu0 0.0
        %601 = vmatpush1.msra.mxu0 0.0
        %602 = vmatprep.subr.mxu0 0.0
        %603 = vmatpush1.msra.mxu0 0.0
        %604 = vmatprep.mubr.f32.mxu0 0.0
        %v605 = vand.u32 %v451, 4294901760
        %606 = vmatmul.mubr.f32.gmra.mrb[0].mxu0 %v605
        %v607 = vpop.f32.mrb[0].mxu0
        %v608 = vadd.f32 %v527, %v607
        %v609 = vpop.f32.mrb[0].mxu0
        %610 = vdwg.mxu0
        %611 = vmatprep.subr.mxu0 0.0
        %v612 = vand.u32 %v447, 4294901760
        %v613 = vsub.f32 %v447, %v612
        %614 = vmatpush1.msra.mxu0 %v613
        %615 = vmatprep.subr.mxu0 0.0
        %v616 = vand.u32 %v448, 4294901760
        %v617 = vsub.f32 %v448, %v616
        %618 = vmatpush1.msra.mxu0 %v617
        %619 = vmatprep.subr.mxu0 0.0
        %620 = vmatpush1.msra.mxu0 0.0
        %621 = vmatprep.subr.mxu0 0.0
        %622 = vmatpush1.msra.mxu0 0.0
        %623 = vmatprep.subr.mxu0 0.0
        %624 = vmatpush1.msra.mxu0 0.0
        %625 = vmatprep.subr.mxu0 0.0
        %626 = vmatpush1.msra.mxu0 0.0
        %627 = vmatprep.subr.mxu0 0.0
        %628 = vmatpush1.msra.mxu0 0.0
        %629 = vmatprep.subr.mxu0 0.0
        %630 = vmatpush1.msra.mxu0 0.0
        %631 = vmatprep.subr.mxu0 0.0
        %632 = vmatpush1.msra.mxu0 0.0
        %633 = vmatprep.subr.mxu0 0.0
        %634 = vmatpush1.msra.mxu0 0.0
        %635 = vmatprep.subr.mxu0 0.0
        %636 = vmatpush1.msra.mxu0 0.0
        %637 = vmatprep.subr.mxu0 0.0
        %638 = vmatpush1.msra.mxu0 0.0
        %639 = vmatprep.subr.mxu0 0.0
        %640 = vmatpush1.msra.mxu0 0.0
        %641 = vmatprep.subr.mxu0 0.0
        %642 = vmatpush1.msra.mxu0 0.0
        %643 = vmatprep.subr.mxu0 0.0
        %644 = vmatpush1.msra.mxu0 0.0
        %645 = vmatprep.subr.mxu0 0.0
        %646 = vmatpush1.msra.mxu0 0.0
        %647 = vmatprep.subr.mxu0 0.0
        %648 = vmatpush1.msra.mxu0 0.0
        %649 = vmatprep.subr.mxu0 0.0
        %650 = vmatpush1.msra.mxu0 0.0
        %651 = vmatprep.subr.mxu0 0.0
        %652 = vmatpush1.msra.mxu0 0.0
        %653 = vmatprep.subr.mxu0 0.0
        %654 = vmatpush1.msra.mxu0 0.0
        %655 = vmatprep.subr.mxu0 0.0
        %656 = vmatpush1.msra.mxu0 0.0
        %657 = vmatprep.subr.mxu0 0.0
        %658 = vmatpush1.msra.mxu0 0.0
        %659 = vmatprep.subr.mxu0 0.0
        %660 = vmatpush1.msra.mxu0 0.0
        %661 = vmatprep.subr.mxu0 0.0
        %662 = vmatpush1.msra.mxu0 0.0
        %663 = vmatprep.subr.mxu0 0.0
        %664 = vmatpush1.msra.mxu0 0.0
        %665 = vmatprep.subr.mxu0 0.0
        %666 = vmatpush1.msra.mxu0 0.0
        %667 = vmatprep.subr.mxu0 0.0
        %668 = vmatpush1.msra.mxu0 0.0
        %669 = vmatprep.subr.mxu0 0.0
        %670 = vmatpush1.msra.mxu0 0.0
        %671 = vmatprep.subr.mxu0 0.0
        %672 = vmatpush1.msra.mxu0 0.0
        %673 = vmatprep.subr.mxu0 0.0
        %674 = vmatpush1.msra.mxu0 0.0
        %675 = vmatprep.subr.mxu0 0.0
        %676 = vmatpush1.msra.mxu0 0.0
        %677 = vmatprep.subr.mxu0 0.0
        %678 = vmatpush1.msra.mxu0 0.0
        %679 = vmatprep.mubr.f32.mxu0 0.0
        %v680 = vand.u32 %v451, 4294901760
        %v681 = vsub.f32 %v451, %v680
        %682 = vmatmul.mubr.f32.gmra.mrb[0].mxu0 %v681
        %v683 = vpop.f32.mrb[0].mxu0
        %v684 = vadd.f32 %v608, %v683
        %v685 = vpop.f32.mrb[0].mxu0
        %686 = vdwg.mxu0
        %687 = vmatprep.subr.mxu0 0.0
        %v688 = vand.u32 %v447, 4294901760
        %689 = vmatpush1.msra.mxu0 %v688
        %690 = vmatprep.subr.mxu0 0.0
        %v691 = vand.u32 %v448, 4294901760
        %692 = vmatpush1.msra.mxu0 %v691
        %693 = vmatprep.subr.mxu0 0.0
        %694 = vmatpush1.msra.mxu0 0.0
        %695 = vmatprep.subr.mxu0 0.0
        %696 = vmatpush1.msra.mxu0 0.0
        %697 = vmatprep.subr.mxu0 0.0
        %698 = vmatpush1.msra.mxu0 0.0
        %699 = vmatprep.subr.mxu0 0.0
        %700 = vmatpush1.msra.mxu0 0.0
        %701 = vmatprep.subr.mxu0 0.0
        %702 = vmatpush1.msra.mxu0 0.0
        %703 = vmatprep.subr.mxu0 0.0
        %704 = vmatpush1.msra.mxu0 0.0
        %705 = vmatprep.subr.mxu0 0.0
        %706 = vmatpush1.msra.mxu0 0.0
        %707 = vmatprep.subr.mxu0 0.0
        %708 = vmatpush1.msra.mxu0 0.0
        %709 = vmatprep.subr.mxu0 0.0
        %710 = vmatpush1.msra.mxu0 0.0
        %711 = vmatprep.subr.mxu0 0.0
        %712 = vmatpush1.msra.mxu0 0.0
        %713 = vmatprep.subr.mxu0 0.0
        %714 = vmatpush1.msra.mxu0 0.0
        %715 = vmatprep.subr.mxu0 0.0
        %716 = vmatpush1.msra.mxu0 0.0
        %717 = vmatprep.subr.mxu0 0.0
        %718 = vmatpush1.msra.mxu0 0.0
        %719 = vmatprep.subr.mxu0 0.0
        %720 = vmatpush1.msra.mxu0 0.0
        %721 = vmatprep.subr.mxu0 0.0
        %722 = vmatpush1.msra.mxu0 0.0
        %723 = vmatprep.subr.mxu0 0.0
        %724 = vmatpush1.msra.mxu0 0.0
        %725 = vmatprep.subr.mxu0 0.0
        %726 = vmatpush1.msra.mxu0 0.0
        %727 = vmatprep.subr.mxu0 0.0
        %728 = vmatpush1.msra.mxu0 0.0
        %729 = vmatprep.subr.mxu0 0.0
        %730 = vmatpush1.msra.mxu0 0.0
        %731 = vmatprep.subr.mxu0 0.0
        %732 = vmatpush1.msra.mxu0 0.0
        %733 = vmatprep.subr.mxu0 0.0
        %734 = vmatpush1.msra.mxu0 0.0
        %735 = vmatprep.subr.mxu0 0.0
        %736 = vmatpush1.msra.mxu0 0.0
        %737 = vmatprep.subr.mxu0 0.0
        %738 = vmatpush1.msra.mxu0 0.0
        %739 = vmatprep.subr.mxu0 0.0
        %740 = vmatpush1.msra.mxu0 0.0
        %741 = vmatprep.subr.mxu0 0.0
        %742 = vmatpush1.msra.mxu0 0.0
        %743 = vmatprep.subr.mxu0 0.0
        %744 = vmatpush1.msra.mxu0 0.0
        %745 = vmatprep.subr.mxu0 0.0
        %746 = vmatpush1.msra.mxu0 0.0
        %747 = vmatprep.subr.mxu0 0.0
        %748 = vmatpush1.msra.mxu0 0.0
        %749 = vmatprep.subr.mxu0 0.0
        %750 = vmatpush1.msra.mxu0 0.0
        %751 = vmatprep.subr.mxu0 0.0
        %752 = vmatpush1.msra.mxu0 0.0
        %753 = vmatprep.mubr.f32.mxu0 0.0
        %v754 = vand.u32 %v451, 4294901760
        %v755 = vsub.f32 %v451, %v754
        %v756 = vand.u32 %v755, 4294901760
        %757 = vmatmul.mubr.f32.gmra.mrb[0].mxu0 %v756
        %v758 = vpop.f32.mrb[0].mxu0
        %v759 = vadd.f32 %v684, %v758
        %v760 = vpop.f32.mrb[0].mxu0
        %761 = vdwg.mxu0
        %762 = vmatprep.subr.mxu0 0.0
        %v763 = vand.u32 %v447, 4294901760
        %v764 = vsub.f32 %v447, %v763
        %v765 = vand.u32 %v764, 4294901760
        %766 = vmatpush1.msra.mxu0 %v765
        %767 = vmatprep.subr.mxu0 0.0
        %v768 = vand.u32 %v448, 4294901760
        %v769 = vsub.f32 %v448, %v768
        %v770 = vand.u32 %v769, 4294901760
        %771 = vmatpush1.msra.mxu0 %v770
        %772 = vmatprep.subr.mxu0 0.0
        %773 = vmatpush1.msra.mxu0 0.0
        %774 = vmatprep.subr.mxu0 0.0
        %775 = vmatpush1.msra.mxu0 0.0
        %776 = vmatprep.subr.mxu0 0.0
        %777 = vmatpush1.msra.mxu0 0.0
        %778 = vmatprep.subr.mxu0 0.0
        %779 = vmatpush1.msra.mxu0 0.0
        %780 = vmatprep.subr.mxu0 0.0
        %781 = vmatpush1.msra.mxu0 0.0
        %782 = vmatprep.subr.mxu0 0.0
        %783 = vmatpush1.msra.mxu0 0.0
        %784 = vmatprep.subr.mxu0 0.0
        %785 = vmatpush1.msra.mxu0 0.0
        %786 = vmatprep.subr.mxu0 0.0
        %787 = vmatpush1.msra.mxu0 0.0
        %788 = vmatprep.subr.mxu0 0.0
        %789 = vmatpush1.msra.mxu0 0.0
        %790 = vmatprep.subr.mxu0 0.0
        %791 = vmatpush1.msra.mxu0 0.0
        %792 = vmatprep.subr.mxu0 0.0
        %793 = vmatpush1.msra.mxu0 0.0
        %794 = vmatprep.subr.mxu0 0.0
        %795 = vmatpush1.msra.mxu0 0.0
        %796 = vmatprep.subr.mxu0 0.0
        %797 = vmatpush1.msra.mxu0 0.0
        %798 = vmatprep.subr.mxu0 0.0
        %799 = vmatpush1.msra.mxu0 0.0
        %800 = vmatprep.subr.mxu0 0.0
        %801 = vmatpush1.msra.mxu0 0.0
        %802 = vmatprep.subr.mxu0 0.0
        %803 = vmatpush1.msra.mxu0 0.0
        %804 = vmatprep.subr.mxu0 0.0
        %805 = vmatpush1.msra.mxu0 0.0
        %806 = vmatprep.subr.mxu0 0.0
        %807 = vmatpush1.msra.mxu0 0.0
        %808 = vmatprep.subr.mxu0 0.0
        %809 = vmatpush1.msra.mxu0 0.0
        %810 = vmatprep.subr.mxu0 0.0
        %811 = vmatpush1.msra.mxu0 0.0
        %812 = vmatprep.subr.mxu0 0.0
        %813 = vmatpush1.msra.mxu0 0.0
        %814 = vmatprep.subr.mxu0 0.0
        %815 = vmatpush1.msra.mxu0 0.0
        %816 = vmatprep.subr.mxu0 0.0
        %817 = vmatpush1.msra.mxu0 0.0
        %818 = vmatprep.subr.mxu0 0.0
        %819 = vmatpush1.msra.mxu0 0.0
        %820 = vmatprep.subr.mxu0 0.0
        %821 = vmatpush1.msra.mxu0 0.0
        %822 = vmatprep.subr.mxu0 0.0
        %823 = vmatpush1.msra.mxu0 0.0
        %824 = vmatprep.subr.mxu0 0.0
        %825 = vmatpush1.msra.mxu0 0.0
        %826 = vmatprep.subr.mxu0 0.0
        %827 = vmatpush1.msra.mxu0 0.0
        %828 = vmatprep.subr.mxu0 0.0
        %829 = vmatpush1.msra.mxu0 0.0
        %830 = vmatprep.subr.mxu0 0.0
        %831 = vmatpush1.msra.mxu0 0.0
        %832 = vmatprep.mubr.f32.mxu0 0.0
        %v833 = vand.u32 %v451, 4294901760
        %834 = vmatmul.mubr.f32.gmra.mrb[0].mxu0 %v833
        %v835 = vpop.f32.mrb[0].mxu0
        %v836 = vadd.f32 %v759, %v835
        %v837 = vpop.f32.mrb[0].mxu0
        %838 = vdwg.mxu0
        %839 = vmatprep.subr.mxu0 0.0
        %v840 = vand.u32 %v447, 4294901760
        %841 = vmatpush1.msra.mxu0 %v840
        %842 = vmatprep.subr.mxu0 0.0
        %v843 = vand.u32 %v448, 4294901760
        %844 = vmatpush1.msra.mxu0 %v843
        %845 = vmatprep.subr.mxu0 0.0
        %846 = vmatpush1.msra.mxu0 0.0
        %847 = vmatprep.subr.mxu0 0.0
        %848 = vmatpush1.msra.mxu0 0.0
        %849 = vmatprep.subr.mxu0 0.0
        %850 = vmatpush1.msra.mxu0 0.0
        %851 = vmatprep.subr.mxu0 0.0
        %852 = vmatpush1.msra.mxu0 0.0
        %853 = vmatprep.subr.mxu0 0.0
        %854 = vmatpush1.msra.mxu0 0.0
        %855 = vmatprep.subr.mxu0 0.0
        %856 = vmatpush1.msra.mxu0 0.0
        %857 = vmatprep.subr.mxu0 0.0
        %858 = vmatpush1.msra.mxu0 0.0
        %859 = vmatprep.subr.mxu0 0.0
        %860 = vmatpush1.msra.mxu0 0.0
        %861 = vmatprep.subr.mxu0 0.0
        %862 = vmatpush1.msra.mxu0 0.0
        %863 = vmatprep.subr.mxu0 0.0
        %864 = vmatpush1.msra.mxu0 0.0
        %865 = vmatprep.subr.mxu0 0.0
        %866 = vmatpush1.msra.mxu0 0.0
        %867 = vmatprep.subr.mxu0 0.0
        %868 = vmatpush1.msra.mxu0 0.0
        %869 = vmatprep.subr.mxu0 0.0
        %870 = vmatpush1.msra.mxu0 0.0
        %871 = vmatprep.subr.mxu0 0.0
        %872 = vmatpush1.msra.mxu0 0.0
        %873 = vmatprep.subr.mxu0 0.0
        %874 = vmatpush1.msra.mxu0 0.0
        %875 = vmatprep.subr.mxu0 0.0
        %876 = vmatpush1.msra.mxu0 0.0
        %877 = vmatprep.subr.mxu0 0.0
        %878 = vmatpush1.msra.mxu0 0.0
        %879 = vmatprep.subr.mxu0 0.0
        %880 = vmatpush1.msra.mxu0 0.0
        %881 = vmatprep.subr.mxu0 0.0
        %882 = vmatpush1.msra.mxu0 0.0
        %883 = vmatprep.subr.mxu0 0.0
        %884 = vmatpush1.msra.mxu0 0.0
        %885 = vmatprep.subr.mxu0 0.0
        %886 = vmatpush1.msra.mxu0 0.0
        %887 = vmatprep.subr.mxu0 0.0
        %888 = vmatpush1.msra.mxu0 0.0
        %889 = vmatprep.subr.mxu0 0.0
        %890 = vmatpush1.msra.mxu0 0.0
        %891 = vmatprep.subr.mxu0 0.0
        %892 = vmatpush1.msra.mxu0 0.0
        %893 = vmatprep.subr.mxu0 0.0
        %894 = vmatpush1.msra.mxu0 0.0
        %895 = vmatprep.subr.mxu0 0.0
        %896 = vmatpush1.msra.mxu0 0.0
        %897 = vmatprep.subr.mxu0 0.0
        %898 = vmatpush1.msra.mxu0 0.0
        %899 = vmatprep.subr.mxu0 0.0
        %900 = vmatpush1.msra.mxu0 0.0
        %901 = vmatprep.subr.mxu0 0.0
        %902 = vmatpush1.msra.mxu0 0.0
        %903 = vmatprep.subr.mxu0 0.0
        %904 = vmatpush1.msra.mxu0 0.0
        %905 = vmatprep.mubr.f32.mxu0 0.0
        %v906 = vand.u32 %v451, 4294901760
        %907 = vmatmul.mubr.f32.gmra.mrb[0].mxu0 %v906
        %v908 = vpop.f32.mrb[0].mxu0
        %v909 = vadd.f32 %v836, %v908
        %v910 = vpop.f32.mrb[0].mxu0
        %911 = vdwg.mxu0
        %v912 = vld [vmem:[%s383] sm:$0x1]
        %v913 = vld [vmem:[%s386] sm:$0x1]
        %914 = vset.pattern.permute.xlu0 0
        %915 = vperm.xlu0 %914, %v387
        %v916 = vpop.permute.xlu0 %915
        %v917 = vlaneseq
        %v918 = vshrl.u32 %v917, 7
        %v919 = vsub.s32 0, %v918
        %v920 = vrot.slane %v912, %v919
        %vm921 = vcmp.lt.s32.totalorder %v916, %v920
        %vm922 = vcmp.eq.s32.totalorder %v916, %v920
        %vm923 = vcmp.eq.f32.partialorder %v913, 0.0
        %v924 = vsel %vm923, 1, 0
        %v925 = vlaneseq
        %v926 = vshrl.u32 %v925, 7
        %v927 = vsub.s32 0, %v926
        %v928 = vrot.slane %v924, %v927
        %vm929 = vcmp.eq.s32.totalorder %v928, 1
        %vm930 = vmand %vm922, %vm929
        %vm931 = vmor %vm921, %vm930
        %v932 = vld [vmem:[#allocation3] sm:$0xff]
        %v933 = vmul.f32 %v909, 10.0
        %935 = vset.pattern.permute.xlu0 0
        %936 = vperm.xlu0 %935, %v932
        %v937 = vpop.permute.xlu0 %936
        %v939 = vsub.f32 %v937, %v933
        %v940 = vmul.f32 %v939, 1.442695
        %v941 = vpow.pop %v940
        %v942 = vld [vmem:[#allocation5] sm:$0xff]
        %v943 = vsel %vm931, %v941, 0.0
        %v944 = vsel %vm449, %v943, 0.0
        %945 = vadd.xlane.f32.xlu0 %v944
        %v946 = vpop.xlane.xlu0 %945
        %v947 = vmul.f32 %v388, %v946
        %v948 = vadd.f32 %v942, %v947
        %vm949 = vcmask 7168
        %950 = vst.msk [vmem:[#allocation5] sm:$0xff] %vm949, %v948
        // Predicated region
        $region57: #{tpu_custom_call.1} parent=47 // pred_check
          %p951 = pneg %p389
        $region58: #{tpu_custom_call.1} parent=47 // pred_check_branch
          %953 = sbr.rel (%p951) target = $region60
        $region59: #{tpu_custom_call.1} parent=47 // pred_region
          %v954 = vlaneseq
          %v955 = vand.u32 %v954, 127
          %vm956 = vcmp.eq.s32.totalorder %v955, 0
          %v957 = vld [vmem:[#allocation2] sm:$0xff]
          %vm958 = vcmp.eq.s32.totalorder %v955, 1
          %v959 = vld [vmem:[#allocation5] sm:$0xff]
          %v960 = vmul.f32 %v959, 0.125
          %vm961 = vcmp.eq.s32.totalorder %v955, 2
          %v962 = vld [vmem:[#allocation4] sm:$0xff]
          %964 = vset.pattern.permute.xlu0 0
          %965 = vperm.xlu0 %964, %v962
          %v966 = vpop.permute.xlu0 %965
          %v968 = vsel %vm961, %v966, 0.0
          %970 = vset.pattern.permute.xlu0 0
          %971 = vperm.xlu0 %970, %v960
          %v972 = vpop.permute.xlu0 %971
          %v974 = vsel %vm958, %v972, %v968
          %976 = vset.pattern.permute.xlu0 0
          %977 = vperm.xlu0 %976, %v957
          %v978 = vpop.permute.xlu0 %977
          %v980 = vsel %vm956, %v978, %v974
          %981 = vst [vmem:[%s364] sm:$0xff] %v980
        $region60: #{tpu_custom_call.1} parent=47 // pred_fallthru
          _
        %s982 = sand.u32 %s224, 1
        %s983 = scalar_lea.sflag [#allocation9], %s982
        %s984 = sand.u32 %s224, 1
        %s985 = smul.addr %s984, 8
        %s986 = scalar_lea.vmem [#allocation10], %s985
        // Predicated region
        $region61: #{tpu_custom_call.1} parent=47 // pred_check
          %p987 = pneg %p234
        $region62: #{tpu_custom_call.1} parent=47 // pred_check_branch
          %989 = sbr.rel (%p987) target = $region64
        $region63: #{tpu_custom_call.1} parent=47 // pred_region
          %s991 = ssub.s32 128, 128
          %992 = vsyncadd %s983, %s991
          %s993 = smul.addr %s26, 128
          %s994 = scalar_lea.hbm %s7, %s993
          %s996 = sshll.u32 %s986, 4
          %s997 = int_to_ptr.vmem [resolvable:$true] %s996
          %999 = dma.vmem_to_hbm [thread:$0]  %s997, 128, %s994, %s983
        $region64: #{tpu_custom_call.1} parent=47 // pred_fallthru
          _
      $region48: #{tpu_custom_call.1} parent=5 // pred_fallthru
        _
      %p1000 = scmp.le.s32.totalorder 2, %s17
      // Predicated region
      $region65: #{tpu_custom_call.1} parent=5 // pred_check
        %p1001 = pneg %p1000
      $region66: #{tpu_custom_call.1} parent=5 // pred_check_branch
        %1003 = sbr.rel (%p1001) target = $region68
      $region67: #{tpu_custom_call.1} parent=5 // pred_region
        %s1004 = ssub.s32 %s17, 2
        // Predicated region
        $region69: #{tpu_custom_call.1} parent=67 // pred_check
          %p1005 = pneg %p240
        $region70: #{tpu_custom_call.1} parent=67 // pred_check_branch
          %1007 = sbr.rel (%p1005) target = $region72
        $region71: #{tpu_custom_call.1} parent=67 // pred_region
          %s1008 = sand.u32 %s225, 1
          %s1009 = scalar_lea.sflag [#allocation9], %s1008
          %s1010 = sand.u32 %s225, 1
          %s1011 = smul.addr %s1010, 8
          %s1012 = scalar_lea.vmem [#allocation10], %s1011
          %1013 = dma.done %s1009, 128
        $region72: #{tpu_custom_call.1} parent=67 // pred_fallthru
          _
      $region68: #{tpu_custom_call.1} parent=5 // pred_fallthru
        _
    $region6: #{tpu_custom_call.1} parent=1 // loop_footer
      %s21 = sadd.s32 1, %s17
    $region7: #{tpu_custom_call.1} parent=1 // loop_footer_branch
      %16 = sbr.rel target = $region3
    $region8: #{tpu_custom_call.1} parent=1 // loop_exit
      _
    %1014 = vsyncpa [#allocation8], 1
    %s1015 = scalar_lea.sflag [#allocation8], 1
    %1016 = vsyncpa %s1015, 1
    %1017 = vsyncpa [#allocation9], 1
    %s1018 = scalar_lea.sflag [#allocation9], 1
    %1019 = vsyncpa %s1018, 1

</llo_original>
